<compile_context>
chip_gen: v7x
topology: tpu7x:2x2x1
jax: 0.10.0
libtpu: 0.0.40
codegen_flags: <defaults>
</compile_context>

<pallas_src>
import jax
import jax.numpy as jnp
from jax.experimental import pallas as pl
from jax.experimental.pallas import tpu as pltpu

IN_FEATURES = 5
OUT_FEATURES = 1
_GROUP = 128                       # batch elements packed per 128-lane group
_MAX_TILE_ROWS = 4096              # rows of 128 batch elems per block (~10 MiB)
_VMEM_LIMIT = 48 * 1024 * 1024     # stays under v7x's 64 MiB physical per-TC


def _cdiv(a, b):
    return -(-a // b)


def _pick_tile(total, max_tile):
    """Rows per block: sublane-aligned, balanced, >= 2 grid steps when possible."""
    if total <= 8:
        return total                       # single full-extent (tiny) block
    steps = max(2, _cdiv(total, max_tile))  # >= 2 steps for v7x's 2 TensorCores
    tile = _cdiv(_cdiv(total, steps), 8) * 8
    return min(tile, max_tile)


def _block_diag_weight(wvec):
    """(5,) weights -> (640, 128) with W[5*j + k, j] = w[k] (else 0)."""
    eye = jnp.eye(_GROUP, dtype=jnp.float32)
    w = eye[:, None, :] * wvec.astype(jnp.float32)[None, :, None]
    return w.reshape(_GROUP * IN_FEATURES, _GROUP)


# --------------------- batch_axis == 0: x laid out (B, 5) -------------------
def _axis0_kernel(xv_ref, whi_ref, wlo_ref, o_ref):
    # xv_ref: (TB, 640) f32; whi/wlo: (640, 128) bf16 resident; o_ref: (TB, 128)
    x = xv_ref[...]
    x_hi = x.astype(jnp.bfloat16)                          # bf16_3x split of x
    x_lo = (x - x_hi.astype(jnp.float32)).astype(jnp.bfloat16)
    w_hi = whi_ref[...]
    acc = jnp.dot(x_hi, w_hi, preferred_element_type=jnp.float32)
    acc = acc + jnp.dot(x_lo, w_hi, preferred_element_type=jnp.float32)
    acc = acc + jnp.dot(x_hi, wlo_ref[...], preferred_element_type=jnp.float32)
    o_ref[...] = acc.astype(o_ref.dtype)


def _linear_axis0(x, weight):
    """x: (B, 5) f32, weight: (1, 5) f32 -> (B, 1) f32."""
    b = x.shape[0]
    nfull = (b // _GROUP) * _GROUP
    if nfull == 0:                         # batch too small for a lane group
        return jnp.sum(x * weight[0][None, :], axis=1, keepdims=True)

    rows = nfull // _GROUP
    x_main = x if nfull == b else x[:nfull]
    xv = x_main.reshape(rows, _GROUP * IN_FEATURES)        # free row-major view

    # bf16_3x weight factors, block-diagonalized once on the host (tiny).
    w = weight[0]
    w_hi = w.astype(jnp.bfloat16)
    w_lo = (w - w_hi.astype(jnp.float32)).astype(jnp.bfloat16)
    w640_hi = _block_diag_weight(w_hi).astype(jnp.bfloat16)
    w640_lo = _block_diag_weight(w_lo).astype(jnp.bfloat16)

    tile = _pick_tile(rows, _MAX_TILE_ROWS)
    grid = _cdiv(rows, tile)               # partial final block handled by Pallas

    out = pl.pallas_call(
        _axis0_kernel,
        out_shape=jax.ShapeDtypeStruct((rows, _GROUP), jnp.float32),
        grid=(grid,),
        in_specs=[
            pl.BlockSpec((tile, _GROUP * IN_FEATURES), lambda i: (i, 0)),
            # Constant block index -> weight stays resident, no per-step DMA.
            pl.BlockSpec((_GROUP * IN_FEATURES, _GROUP), lambda i: (0, 0)),
            pl.BlockSpec((_GROUP * IN_FEATURES, _GROUP), lambda i: (0, 0)),
        ],
        out_specs=pl.BlockSpec((tile, _GROUP), lambda i: (i, 0)),
        compiler_params=pltpu.CompilerParams(
            dimension_semantics=("parallel",),
            vmem_limit_bytes=_VMEM_LIMIT,
        ),
    )(xv, w640_hi, w640_lo)

    out = out.reshape(nfull, OUT_FEATURES)                 # free row-major view
    if nfull == b:
        return out
    tail = jnp.sum(x[nfull:] * weight[0][None, :], axis=1, keepdims=True)
    return jnp.concatenate([out, tail], axis=0)


# --------------------- batch_axis == 1: x laid out (5, B) -------------------
def _axis1_kernel(w_ref, x_ref, o_ref):
    # w_ref: SMEM (1, 5) f32; x_ref: (5, TB, 128) f32; o_ref: (TB, 128) f32
    acc = x_ref[0] * w_ref[0, 0]
    for k in range(1, IN_FEATURES):        # 4 more broadcast FMAs on the VPU
        acc = acc + x_ref[k] * w_ref[0, k]
    o_ref[...] = acc.astype(o_ref.dtype)


def _linear_axis1(x_t, weight):
    """x_t: (5, B) f32 (features, batch) -> (B, 1) without an HBM transpose."""
    b = x_t.shape[1]
    nfull = (b // _GROUP) * _GROUP
    if nfull == 0:
        return jnp.sum(x_t * weight[0][:, None], axis=0)[:, None]

    rows = nfull // _GROUP
    x_main = x_t if nfull == b else x_t[:, :nfull]
    x3 = x_main.reshape(IN_FEATURES, rows, _GROUP)         # free row-major view

    tile = _pick_tile(rows, _MAX_TILE_ROWS)
    grid = _cdiv(rows, tile)

    out = pl.pallas_call(
        _axis1_kernel,
        out_shape=jax.ShapeDtypeStruct((rows, _GROUP), jnp.float32),
        grid=(grid,),
        in_specs=[
            # Tiny weight lives in SMEM as scalars (read per step, free).
            pl.BlockSpec(memory_space=pltpu.MemorySpace.SMEM),
            pl.BlockSpec((IN_FEATURES, tile, _GROUP), lambda i: (0, i, 0)),
        ],
        out_specs=pl.BlockSpec((tile, _GROUP), lambda i: (i, 0)),
        compiler_params=pltpu.CompilerParams(
            dimension_semantics=("parallel",),
            vmem_limit_bytes=_VMEM_LIMIT,
        ),
    )(weight, x3)

    out = out.reshape(nfull, OUT_FEATURES)                 # free row-major view
    if nfull == b:
        return out
    tail = jnp.sum(x_t[:, nfull:] * weight[0][:, None], axis=0)[:, None]
    return jnp.concatenate([out, tail], axis=0)


# --------------------------------- wrapper ----------------------------------
def linear_model_with_batch_axis(x, weight, batch_axis=0):
    """Pallas equivalent of LinearModelWithBatchAxis.forward."""
    if batch_axis == 1:
        # Reference permutes (5, B) -> (B, 5), applies the linear layer, then
        # applies an identity permute; we consume the (features, batch) layout
        # directly instead of paying an HBM transpose pass.
        return _linear_axis1(x, weight)
    return _linear_axis0(x, weight)


if __name__ == "__main__":
    key = jax.random.PRNGKey(0)

    # torch.nn.init.ones_(self.linear.weight)
    weight = jnp.ones((OUT_FEATURES, IN_FEATURES), dtype=jnp.float32)

    def reference(xb5):
        # Exact f32 reference (avoids XLA default-matmul-precision ambiguity).
        return jnp.sum(xb5 * weight[0][None, :], axis=1, keepdims=True)

    # 128-aligned batch, and a ragged batch (partial block + jnp tail).
    for batch in (256, 1287):
        kx, key = jax.random.split(key)
        x = jax.random.normal(kx, (batch, IN_FEATURES), dtype=jnp.float32)
        ref = reference(x)

        # batch_axis = 0: input laid out (batch, features)
        out0 = jax.block_until_ready(
            linear_model_with_batch_axis(x, weight, batch_axis=0))
        assert out0.shape == (batch, OUT_FEATURES)
        assert jnp.allclose(out0, ref, atol=1e-4, rtol=1e-4)

        # batch_axis = 1: input laid out (features, batch)
        x_t = jnp.transpose(x, (1, 0))
        out1 = jax.block_until_ready(
            linear_model_with_batch_axis(x_t, weight, batch_axis=1))
        assert out1.shape == (batch, OUT_FEATURES)
        assert jnp.allclose(out1, ref, atol=1e-4, rtol=1e-4)

    print("KERNEL_OK")
</pallas_src>

<mosaic_0001>
module attributes {stable_mosaic.version = 11 : i64} {
  func.func @_axis0_kernel(%arg0: i32, %arg1: memref<2x640xf32, #tpu.memory_space<vmem>>, %arg2: memref<640x128xbf16, #tpu.memory_space<vmem>>, %arg3: memref<640x128xbf16, #tpu.memory_space<vmem>>, %arg4: memref<2x128xf32, #tpu.memory_space<vmem>>) attributes {dimension_semantics = [#tpu.dimension_semantics<parallel>], iteration_bounds = array<i64: 1>, scalar_prefetch = 0 : i64, scratch_operands = 0 : i64, tpu.core_type = #tpu.core_type<tc>, window_params = [{transform_indices = @transform_0, window_bounds = array<i64: 2, 640>}, {pipeline_mode = #tpu.pipeline_mode<synchronous>, transform_indices = @transform_1, window_bounds = array<i64: 640, 128>}, {pipeline_mode = #tpu.pipeline_mode<synchronous>, transform_indices = @transform_2, window_bounds = array<i64: 640, 128>}, {transform_indices = @transform_3, window_bounds = array<i64: 2, 128>}]} {
    %c0 = arith.constant 0 : index
    %c0_0 = arith.constant 0 : index
    %0 = vector.load %arg1[%c0, %c0_0] : memref<2x640xf32, #tpu.memory_space<vmem>>, vector<2x640xf32>
    %1 = arith.truncf %0 : vector<2x640xf32> to vector<2x640xbf16>
    %2 = arith.extf %1 : vector<2x640xbf16> to vector<2x640xf32>
    %3 = arith.subf %0, %2 : vector<2x640xf32>
    %4 = arith.truncf %3 : vector<2x640xf32> to vector<2x640xbf16>
    %c0_1 = arith.constant 0 : index
    %c0_2 = arith.constant 0 : index
    %5 = vector.load %arg2[%c0_1, %c0_2] : memref<640x128xbf16, #tpu.memory_space<vmem>>, vector<640x128xbf16>
    %cst = arith.constant dense<0.000000e+00> : vector<2x128xf32>
    %6 = tpu.matmul %1, %5, %cst {dimension_numbers = #tpu.dot_dimension_numbers<[1], [0], [0], [1], [0, 0, 1, 1], [], []>} : vector<2x640xbf16>, vector<640x128xbf16>, vector<2x128xf32> -> vector<2x128xf32>
    %cst_3 = arith.constant dense<0.000000e+00> : vector<2x128xf32>
    %7 = tpu.matmul %4, %5, %cst_3 {dimension_numbers = #tpu.dot_dimension_numbers<[1], [0], [0], [1], [0, 0, 1, 1], [], []>} : vector<2x640xbf16>, vector<640x128xbf16>, vector<2x128xf32> -> vector<2x128xf32>
    %8 = arith.addf %6, %7 : vector<2x128xf32>
    %c0_4 = arith.constant 0 : index
    %c0_5 = arith.constant 0 : index
    %9 = vector.load %arg3[%c0_4, %c0_5] : memref<640x128xbf16, #tpu.memory_space<vmem>>, vector<640x128xbf16>
    %cst_6 = arith.constant dense<0.000000e+00> : vector<2x128xf32>
    %10 = tpu.matmul %1, %9, %cst_6 {dimension_numbers = #tpu.dot_dimension_numbers<[1], [0], [0], [1], [0, 0, 1, 1], [], []>} : vector<2x640xbf16>, vector<640x128xbf16>, vector<2x128xf32> -> vector<2x128xf32>
    %11 = arith.addf %8, %10 : vector<2x128xf32>
    %c0_7 = arith.constant 0 : index
    %c0_8 = arith.constant 0 : index
    %12 = vector.load %arg4[%c0_7, %c0_8] : memref<2x128xf32, #tpu.memory_space<vmem>>, vector<2x128xf32>
    tpu.vector_store %arg4[%c0_7, %c0_8], %11 {strides = array<i32>} : memref<2x128xf32, #tpu.memory_space<vmem>>, vector<2x128xf32>,
    return
  }
  func.func @transform_0(%arg0: i32) -> (i32, i32) {
    %c0_i32 = arith.constant 0 : i32
    %c0_i32_0 = arith.constant 0 : i32
    return %arg0, %c0_i32 : i32, i32
  }
  func.func @transform_1(%arg0: i32) -> (i32, i32) {
    %c0_i32 = arith.constant 0 : i32
    %c0_i32_0 = arith.constant 0 : i32
    %c0_i32_1 = arith.constant 0 : i32
    return %c0_i32, %c0_i32_0 : i32, i32
  }
  func.func @transform_2(%arg0: i32) -> (i32, i32) {
    %c0_i32 = arith.constant 0 : i32
    %c0_i32_0 = arith.constant 0 : i32
    %c0_i32_1 = arith.constant 0 : i32
    return %c0_i32, %c0_i32_0 : i32, i32
  }
  func.func @transform_3(%arg0: i32) -> (i32, i32) {
    %c0_i32 = arith.constant 0 : i32
    %c0_i32_0 = arith.constant 0 : i32
    return %arg0, %c0_i32 : i32, i32
  }
}

</mosaic_0001>

<llo_original>
// kernel: tpu_custom_call.1
$region0: #{tpu_custom_call.1}
  #allocation0 [shape = 'u32[]', space=smem, size = 0x4, offset = 0x4, fixed_abs, tag = 'smem constant byte address 0x4 - core index']
  #allocation1 [shape = 'u32[144,128]{1,0:T(1,128)}', space=vmem, size = 0x12000, scoped, tag = 'internal scratch']
  %s0 = inlined_call_operand.hbm [shape: f32[2,640], index: 0, kind: input, shape index: {}]
  %s1 = inlined_call_operand.hbm [shape: bf16[640,128], index: 1, kind: input, shape index: {}]
  %s2 = inlined_call_operand.hbm [shape: bf16[640,128], index: 2, kind: input, shape index: {}]
  %s3 = inlined_call_operand.hbm [shape: f32[2,128], index: 3, kind: output, shape index: {}]
  %s4 = sld [smem:[#allocation0]]
  $region34: #{tpu_custom_call.1} parent=0
    _
  %s6 = ssub.s32 1, %s4
  %s7 = scalar_select 0, %s6, %s4
  $region1: #{tpu_custom_call.1} parent=0
    #allocation2 [shape = 'u8[5120]{0}', space=vmem, size = 0x1400, scoped, tag = 'input window, operand 0, single buffered']
    #allocation3 [shape = 's32[1]{0}', space=sflag, size = 0x4, scoped, tag = 'scoped memory for tpu_custom_call.1']
    #allocation4 [shape = 's32[1]{0}', space=sflag, size = 0x4, scoped, tag = 'scoped memory for tpu_custom_call.1']
    #allocation5 [shape = 'u8[163840]{0}', space=vmem, size = 0x28000, scoped, tag = 'input window, operand 1, single buffered']
    #allocation6 [shape = 's32[1]{0}', space=sflag, size = 0x4, scoped, tag = 'scoped memory for tpu_custom_call.1']
    #allocation7 [shape = 'u8[163840]{0}', space=vmem, size = 0x28000, scoped, tag = 'input window, operand 2, single buffered']
    #allocation8 [shape = 'u8[1024]{0}', space=vmem, size = 0x400, scoped, tag = 'output window, operand 0, single buffered']
    %8 = vsyncpa [#allocation3], 0
    %9 = vsyncpa [#allocation6], 0
    %10 = vsyncpa [#allocation4], 0
    // Predicated region
    $region2: #{tpu_custom_call.1} parent=1 // pred_check
      _
    $region3: #{tpu_custom_call.1} parent=1 // pred_check_branch
      %12 = sbr.rel (0) target = $region5
    $region4: #{tpu_custom_call.1} parent=1 // pred_region
      %s14 = ssub.s32 160, 160
      %15 = vsyncadd [#allocation3], %s14
      %s17 = sshll.u32 [#allocation2], 4
      %s18 = int_to_ptr.vmem [resolvable:$true] %s17
      %20 = dma.hbm_to_vmem [thread:$0]  %s0, 160, %s18, [#allocation3]
    $region5: #{tpu_custom_call.1} parent=1 // pred_fallthru
      _
    // Predicated region
    $region6: #{tpu_custom_call.1} parent=1 // pred_check
      _
    $region7: #{tpu_custom_call.1} parent=1 // pred_check_branch
      %22 = sbr.rel (0) target = $region9
    $region8: #{tpu_custom_call.1} parent=1 // pred_region
      %s24 = ssub.s32 5120, 5120
      %25 = vsyncadd [#allocation6], %s24
      %s26 = sshll.u32 [#allocation5], 4
      %s27 = int_to_ptr.vmem [resolvable:$true] %s26
      %32 = dma.hbm_to_vmem [thread:$0]  %s1, 5120, %s27, [#allocation6], 64, 64, 4
    $region9: #{tpu_custom_call.1} parent=1 // pred_fallthru
      _
    // Predicated region
    $region10: #{tpu_custom_call.1} parent=1 // pred_check
      _
    $region11: #{tpu_custom_call.1} parent=1 // pred_check_branch
      %34 = sbr.rel (0) target = $region13
    $region12: #{tpu_custom_call.1} parent=1 // pred_region
      %s36 = ssub.s32 5120, 5120
      %37 = vsyncadd [#allocation6], %s36
      %s38 = sshll.u32 [#allocation7], 4
      %s39 = int_to_ptr.vmem [resolvable:$true] %s38
      %44 = dma.hbm_to_vmem [thread:$0]  %s2, 5120, %s39, [#allocation6], 64, 64, 4
    $region13: #{tpu_custom_call.1} parent=1 // pred_fallthru
      _
    // Predicated region
    $region14: #{tpu_custom_call.1} parent=1 // pred_check
      _
    $region15: #{tpu_custom_call.1} parent=1 // pred_check_branch
      %46 = sbr.rel (0) target = $region17
    $region16: #{tpu_custom_call.1} parent=1 // pred_region
      %47 = dma.done [#allocation3], 160
    $region17: #{tpu_custom_call.1} parent=1 // pred_fallthru
      _
    // Predicated region
    $region18: #{tpu_custom_call.1} parent=1 // pred_check
      _
    $region19: #{tpu_custom_call.1} parent=1 // pred_check_branch
      %49 = sbr.rel (0) target = $region21
    $region20: #{tpu_custom_call.1} parent=1 // pred_region
      %50 = dma.done [#allocation6], 5120
    $region21: #{tpu_custom_call.1} parent=1 // pred_fallthru
      _
    // Predicated region
    $region22: #{tpu_custom_call.1} parent=1 // pred_check
      _
    $region23: #{tpu_custom_call.1} parent=1 // pred_check_branch
      %52 = sbr.rel (0) target = $region25
    $region24: #{tpu_custom_call.1} parent=1 // pred_region
      %53 = dma.done [#allocation6], 5120
    $region25: #{tpu_custom_call.1} parent=1 // pred_fallthru
      _
    %v55 = vld [vmem:[#allocation2] sm:$0xff]
    %v56 = vld [vmem:[#allocation2 + $0x8] sm:$0x3]
    %v59 = vcombine.high %v55, %v55
    %v61 = vunpack.c.l.s4 1983009808
    %v62 = vunpack.c.0.s8 %v61
    %v63 = vlaneseq
    %v64 = vshrl.u32 %v63, 7
    %v65 = vsub.s32 %v62, %v64
    %v66 = vrot.slane %v55, %v65
    %v68 = vunpack.c.l.s4 1983009808
    %v69 = vunpack.c.0.s8 %v68
    %v70 = vlaneseq
    %v71 = vshrl.u32 %v70, 7
    %v72 = vsub.s32 %v69, %v71
    %v73 = vrot.slane %v59, %v72
    %v74 = vcombine.high %v66, %v66
    %v75 = vcombine.high %v73, %v73
    %v77 = vunpack.c.l.s4 1983009808
    %v78 = vunpack.c.0.s8 %v77
    %v79 = vlaneseq
    %v80 = vshrl.u32 %v79, 7
    %v81 = vsub.s32 %v78, %v80
    %v82 = vrot.slane %v56, %v81
    %v88 = vpack.c.bf16 %v66, %v66
    %v89 = vpack.c.bf16 %v74, %v74
    %v90 = vpack.c.bf16 %v73, %v73
    %v91 = vpack.c.bf16 %v75, %v75
    %v92 = vpack.c.bf16 %v82, %v82
    %v93 = vunpack.c.l.bf16 %v88
    %v94 = vunpack.c.l.bf16 %v89
    %v95 = vunpack.c.l.bf16 %v90
    %v96 = vunpack.c.l.bf16 %v91
    %v97 = vunpack.c.l.bf16 %v92
    %v103 = vcombine.low %v93, %v94
    %v104 = vcombine.low %v95, %v96
    %v106 = vunpack.c.l.s4 1983009808
    %v107 = vunpack.c.0.s8 %v106
    %v108 = vlaneseq
    %v109 = vshrl.u32 %v108, 7
    %v110 = vsub.s32 %v107, %v109
    %v111 = vrot.slane %v103, %v110
    %v113 = vunpack.c.l.s4 1983009808
    %v114 = vunpack.c.0.s8 %v113
    %v115 = vlaneseq
    %v116 = vshrl.u32 %v115, 7
    %v117 = vsub.s32 %v114, %v116
    %v118 = vrot.slane %v104, %v117
    %v119 = vcombine.low %v111, %v118
    %v121 = vunpack.c.l.s4 1983009808
    %v122 = vunpack.c.0.s8 %v121
    %v123 = vlaneseq
    %v124 = vshrl.u32 %v123, 7
    %v125 = vsub.s32 %v122, %v124
    %v126 = vrot.slane %v97, %v125
    %v129 = vsub.f32 %v55, %v119
    %v130 = vsub.f32 %v56, %v126
    %v133 = vcombine.high %v129, %v129
    %v135 = vunpack.c.l.s4 1983009808
    %v136 = vunpack.c.0.s8 %v135
    %v137 = vlaneseq
    %v138 = vshrl.u32 %v137, 7
    %v139 = vsub.s32 %v136, %v138
    %v140 = vrot.slane %v129, %v139
    %v142 = vunpack.c.l.s4 1983009808
    %v143 = vunpack.c.0.s8 %v142
    %v144 = vlaneseq
    %v145 = vshrl.u32 %v144, 7
    %v146 = vsub.s32 %v143, %v145
    %v147 = vrot.slane %v133, %v146
    %v148 = vcombine.high %v140, %v140
    %v149 = vcombine.high %v147, %v147
    %v151 = vunpack.c.l.s4 1983009808
    %v152 = vunpack.c.0.s8 %v151
    %v153 = vlaneseq
    %v154 = vshrl.u32 %v153, 7
    %v155 = vsub.s32 %v152, %v154
    %v156 = vrot.slane %v130, %v155
    %v162 = vpack.c.bf16 %v140, %v140
    %v163 = vpack.c.bf16 %v148, %v148
    %v164 = vpack.c.bf16 %v147, %v147
    %v165 = vpack.c.bf16 %v149, %v149
    %v166 = vpack.c.bf16 %v156, %v156
    %v167 = vld [vmem:[#allocation5] sm:$0xf]
    %v168 = vld [vmem:[#allocation5 + $0x4] sm:$0xf]
    %v169 = vld [vmem:[#allocation5 + $0x8] sm:$0xf]
    %v170 = vld [vmem:[#allocation5 + $0xc] sm:$0xf]
    %v171 = vld [vmem:[#allocation5 + $0x10] sm:$0xf]
    %v172 = vld [vmem:[#allocation5 + $0x14] sm:$0xf]
    %v173 = vld [vmem:[#allocation5 + $0x18] sm:$0xf]
    %v174 = vld [vmem:[#allocation5 + $0x1c] sm:$0xf]
    %v175 = vld [vmem:[#allocation5 + $0x20] sm:$0xf]
    %v176 = vld [vmem:[#allocation5 + $0x24] sm:$0xf]
    %v177 = vld [vmem:[#allocation5 + $0x28] sm:$0xf]
    %v178 = vld [vmem:[#allocation5 + $0x2c] sm:$0xf]
    %v179 = vld [vmem:[#allocation5 + $0x30] sm:$0xf]
    %v180 = vld [vmem:[#allocation5 + $0x34] sm:$0xf]
    %v181 = vld [vmem:[#allocation5 + $0x38] sm:$0xf]
    %v182 = vld [vmem:[#allocation5 + $0x3c] sm:$0xf]
    %v183 = vld [vmem:[#allocation5 + $0x40] sm:$0xf]
    %v184 = vld [vmem:[#allocation5 + $0x44] sm:$0xf]
    %v185 = vld [vmem:[#allocation5 + $0x48] sm:$0xf]
    %v186 = vld [vmem:[#allocation5 + $0x4c] sm:$0xf]
    %v187 = vld [vmem:[#allocation5 + $0x50] sm:$0xf]
    %v188 = vld [vmem:[#allocation5 + $0x54] sm:$0xf]
    %v189 = vld [vmem:[#allocation5 + $0x58] sm:$0xf]
    %v190 = vld [vmem:[#allocation5 + $0x5c] sm:$0xf]
    %v191 = vld [vmem:[#allocation5 + $0x60] sm:$0xf]
    %v192 = vld [vmem:[#allocation5 + $0x64] sm:$0xf]
    %v193 = vld [vmem:[#allocation5 + $0x68] sm:$0xf]
    %v194 = vld [vmem:[#allocation5 + $0x6c] sm:$0xf]
    %v195 = vld [vmem:[#allocation5 + $0x70] sm:$0xf]
    %v196 = vld [vmem:[#allocation5 + $0x74] sm:$0xf]
    %v197 = vld [vmem:[#allocation5 + $0x78] sm:$0xf]
    %v198 = vld [vmem:[#allocation5 + $0x7c] sm:$0xf]
    %v199 = vld [vmem:[#allocation5 + $0x80] sm:$0xf]
    %v200 = vld [vmem:[#allocation5 + $0x84] sm:$0xf]
    %v201 = vld [vmem:[#allocation5 + $0x88] sm:$0xf]
    %v202 = vld [vmem:[#allocation5 + $0x8c] sm:$0xf]
    %v203 = vld [vmem:[#allocation5 + $0x90] sm:$0xf]
    %v204 = vld [vmem:[#allocation5 + $0x94] sm:$0xf]
    %v205 = vld [vmem:[#allocation5 + $0x98] sm:$0xf]
    %v206 = vld [vmem:[#allocation5 + $0x9c] sm:$0xf]
    %v207 = vld [vmem:[#allocation5 + $0xa0] sm:$0xf]
    %v208 = vld [vmem:[#allocation5 + $0xa4] sm:$0xf]
    %v209 = vld [vmem:[#allocation5 + $0xa8] sm:$0xf]
    %v210 = vld [vmem:[#allocation5 + $0xac] sm:$0xf]
    %v211 = vld [vmem:[#allocation5 + $0xb0] sm:$0xf]
    %v212 = vld [vmem:[#allocation5 + $0xb4] sm:$0xf]
    %v213 = vld [vmem:[#allocation5 + $0xb8] sm:$0xf]
    %v214 = vld [vmem:[#allocation5 + $0xbc] sm:$0xf]
    %v215 = vld [vmem:[#allocation5 + $0xc0] sm:$0xf]
    %v216 = vld [vmem:[#allocation5 + $0xc4] sm:$0xf]
    %v217 = vld [vmem:[#allocation5 + $0xc8] sm:$0xf]
    %v218 = vld [vmem:[#allocation5 + $0xcc] sm:$0xf]
    %v219 = vld [vmem:[#allocation5 + $0xd0] sm:$0xf]
    %v220 = vld [vmem:[#allocation5 + $0xd4] sm:$0xf]
    %v221 = vld [vmem:[#allocation5 + $0xd8] sm:$0xf]
    %v222 = vld [vmem:[#allocation5 + $0xdc] sm:$0xf]
    %v223 = vld [vmem:[#allocation5 + $0xe0] sm:$0xf]
    %v224 = vld [vmem:[#allocation5 + $0xe4] sm:$0xf]
    %v225 = vld [vmem:[#allocation5 + $0xe8] sm:$0xf]
    %v226 = vld [vmem:[#allocation5 + $0xec] sm:$0xf]
    %v227 = vld [vmem:[#allocation5 + $0xf0] sm:$0xf]
    %v228 = vld [vmem:[#allocation5 + $0xf4] sm:$0xf]
    %v229 = vld [vmem:[#allocation5 + $0xf8] sm:$0xf]
    %v230 = vld [vmem:[#allocation5 + $0xfc] sm:$0xf]
    %v231 = vld [vmem:[#allocation5 + $0x100] sm:$0xf]
    %v232 = vld [vmem:[#allocation5 + $0x104] sm:$0xf]
    %v233 = vld [vmem:[#allocation5 + $0x108] sm:$0xf]
    %v234 = vld [vmem:[#allocation5 + $0x10c] sm:$0xf]
    %v235 = vld [vmem:[#allocation5 + $0x110] sm:$0xf]
    %v236 = vld [vmem:[#allocation5 + $0x114] sm:$0xf]
    %v237 = vld [vmem:[#allocation5 + $0x118] sm:$0xf]
    %v238 = vld [vmem:[#allocation5 + $0x11c] sm:$0xf]
    %v239 = vld [vmem:[#allocation5 + $0x120] sm:$0xf]
    %v240 = vld [vmem:[#allocation5 + $0x124] sm:$0xf]
    %v241 = vld [vmem:[#allocation5 + $0x128] sm:$0xf]
    %v242 = vld [vmem:[#allocation5 + $0x12c] sm:$0xf]
    %v243 = vld [vmem:[#allocation5 + $0x130] sm:$0xf]
    %v244 = vld [vmem:[#allocation5 + $0x134] sm:$0xf]
    %v245 = vld [vmem:[#allocation5 + $0x138] sm:$0xf]
    %v246 = vld [vmem:[#allocation5 + $0x13c] sm:$0xf]
    %v327 = vunpack.c.l.b16 %v167
    %v328 = vunpack.c.l.b16 %v168
    %v329 = vunpack.c.l.b16 %v169
    %v330 = vunpack.c.l.b16 %v170
    %v331 = vunpack.c.l.b16 %v171
    %v332 = vunpack.c.l.b16 %v172
    %v333 = vunpack.c.l.b16 %v173
    %v334 = vunpack.c.l.b16 %v174
    %v335 = vunpack.c.l.b16 %v175
    %v336 = vunpack.c.l.b16 %v176
    %v337 = vunpack.c.l.b16 %v177
    %v338 = vunpack.c.l.b16 %v178
    %v339 = vunpack.c.l.b16 %v179
    %v340 = vunpack.c.l.b16 %v180
    %v341 = vunpack.c.l.b16 %v181
    %v342 = vunpack.c.l.b16 %v182
    %v343 = vunpack.c.l.b16 %v183
    %v344 = vunpack.c.l.b16 %v184
    %v345 = vunpack.c.l.b16 %v185
    %v346 = vunpack.c.l.b16 %v186
    %v347 = vunpack.c.l.b16 %v187
    %v348 = vunpack.c.l.b16 %v188
    %v349 = vunpack.c.l.b16 %v189
    %v350 = vunpack.c.l.b16 %v190
    %v351 = vunpack.c.l.b16 %v191
    %v352 = vunpack.c.l.b16 %v192
    %v353 = vunpack.c.l.b16 %v193
    %v354 = vunpack.c.l.b16 %v194
    %v355 = vunpack.c.l.b16 %v195
    %v356 = vunpack.c.l.b16 %v196
    %v357 = vunpack.c.l.b16 %v197
    %v358 = vunpack.c.l.b16 %v198
    %v359 = vunpack.c.l.b16 %v199
    %v360 = vunpack.c.l.b16 %v200
    %v361 = vunpack.c.l.b16 %v201
    %v362 = vunpack.c.l.b16 %v202
    %v363 = vunpack.c.l.b16 %v203
    %v364 = vunpack.c.l.b16 %v204
    %v365 = vunpack.c.l.b16 %v205
    %v366 = vunpack.c.l.b16 %v206
    %v367 = vunpack.c.l.b16 %v207
    %v368 = vunpack.c.l.b16 %v208
    %v369 = vunpack.c.l.b16 %v209
    %v370 = vunpack.c.l.b16 %v210
    %v371 = vunpack.c.l.b16 %v211
    %v372 = vunpack.c.l.b16 %v212
    %v373 = vunpack.c.l.b16 %v213
    %v374 = vunpack.c.l.b16 %v214
    %v375 = vunpack.c.l.b16 %v215
    %v376 = vunpack.c.l.b16 %v216
    %v377 = vunpack.c.l.b16 %v217
    %v378 = vunpack.c.l.b16 %v218
    %v379 = vunpack.c.l.b16 %v219
    %v380 = vunpack.c.l.b16 %v220
    %v381 = vunpack.c.l.b16 %v221
    %v382 = vunpack.c.l.b16 %v222
    %v383 = vunpack.c.l.b16 %v223
    %v384 = vunpack.c.l.b16 %v224
    %v385 = vunpack.c.l.b16 %v225
    %v386 = vunpack.c.l.b16 %v226
    %v387 = vunpack.c.l.b16 %v227
    %v388 = vunpack.c.l.b16 %v228
    %v389 = vunpack.c.l.b16 %v229
    %v390 = vunpack.c.l.b16 %v230
    %v391 = vunpack.c.l.b16 %v231
    %v392 = vunpack.c.l.b16 %v232
    %v393 = vunpack.c.l.b16 %v233
    %v394 = vunpack.c.l.b16 %v234
    %v395 = vunpack.c.l.b16 %v235
    %v396 = vunpack.c.l.b16 %v236
    %v397 = vunpack.c.l.b16 %v237
    %v398 = vunpack.c.l.b16 %v238
    %v399 = vunpack.c.l.b16 %v239
    %v400 = vunpack.c.l.b16 %v240
    %v401 = vunpack.c.l.b16 %v241
    %v402 = vunpack.c.l.b16 %v242
    %v403 = vunpack.c.l.b16 %v243
    %v404 = vunpack.c.l.b16 %v244
    %v405 = vunpack.c.l.b16 %v245
    %v406 = vunpack.c.l.b16 %v246
    %v407 = vpack.c.b16 %v328, %v327
    %v408 = vpack.c.b16 %v330, %v329
    %v409 = vpack.c.b16 %v332, %v331
    %v410 = vpack.c.b16 %v334, %v333
    %v411 = vpack.c.b16 %v336, %v335
    %v412 = vpack.c.b16 %v338, %v337
    %v413 = vpack.c.b16 %v340, %v339
    %v414 = vpack.c.b16 %v342, %v341
    %v415 = vpack.c.b16 %v344, %v343
    %v416 = vpack.c.b16 %v346, %v345
    %v417 = vpack.c.b16 %v348, %v347
    %v418 = vpack.c.b16 %v350, %v349
    %v419 = vpack.c.b16 %v352, %v351
    %v420 = vpack.c.b16 %v354, %v353
    %v421 = vpack.c.b16 %v356, %v355
    %v422 = vpack.c.b16 %v358, %v357
    %v423 = vpack.c.b16 %v360, %v359
    %v424 = vpack.c.b16 %v362, %v361
    %v425 = vpack.c.b16 %v364, %v363
    %v426 = vpack.c.b16 %v366, %v365
    %v427 = vpack.c.b16 %v368, %v367
    %v428 = vpack.c.b16 %v370, %v369
    %v429 = vpack.c.b16 %v372, %v371
    %v430 = vpack.c.b16 %v374, %v373
    %v431 = vpack.c.b16 %v376, %v375
    %v432 = vpack.c.b16 %v378, %v377
    %v433 = vpack.c.b16 %v380, %v379
    %v434 = vpack.c.b16 %v382, %v381
    %v435 = vpack.c.b16 %v384, %v383
    %v436 = vpack.c.b16 %v386, %v385
    %v437 = vpack.c.b16 %v388, %v387
    %v438 = vpack.c.b16 %v390, %v389
    %v439 = vpack.c.b16 %v392, %v391
    %v440 = vpack.c.b16 %v394, %v393
    %v441 = vpack.c.b16 %v396, %v395
    %v442 = vpack.c.b16 %v398, %v397
    %v443 = vpack.c.b16 %v400, %v399
    %v444 = vpack.c.b16 %v402, %v401
    %v445 = vpack.c.b16 %v404, %v403
    %v446 = vpack.c.b16 %v406, %v405
    %487 = vmatprep.subr.bf16.mxu0 0
    %488 = vmatpush1.bf16.msra.mxu0 %v407
    %489 = vmatprep.subr.bf16.mxu0 0
    %490 = vmatpush1.bf16.msra.mxu0 %v408
    %491 = vmatprep.subr.bf16.mxu0 0
    %492 = vmatpush1.bf16.msra.mxu0 %v409
    %493 = vmatprep.subr.bf16.mxu0 0
    %494 = vmatpush1.bf16.msra.mxu0 %v410
    %495 = vmatprep.subr.bf16.mxu0 0
    %496 = vmatpush1.bf16.msra.mxu0 %v411
    %497 = vmatprep.subr.bf16.mxu0 0
    %498 = vmatpush1.bf16.msra.mxu0 %v412
    %499 = vmatprep.subr.bf16.mxu0 0
    %500 = vmatpush1.bf16.msra.mxu0 %v413
    %501 = vmatprep.subr.bf16.mxu0 0
    %502 = vmatpush1.bf16.msra.mxu0 %v414
    %503 = vmatprep.subr.bf16.mxu0 0
    %504 = vmatpush1.bf16.msra.mxu0 %v415
    %505 = vmatprep.subr.bf16.mxu0 0
    %506 = vmatpush1.bf16.msra.mxu0 %v416
    %507 = vmatprep.subr.bf16.mxu0 0
    %508 = vmatpush1.bf16.msra.mxu0 %v417
    %509 = vmatprep.subr.bf16.mxu0 0
    %510 = vmatpush1.bf16.msra.mxu0 %v418
    %511 = vmatprep.subr.bf16.mxu0 0
    %512 = vmatpush1.bf16.msra.mxu0 %v419
    %513 = vmatprep.subr.bf16.mxu0 0
    %514 = vmatpush1.bf16.msra.mxu0 %v420
    %515 = vmatprep.subr.bf16.mxu0 0
    %516 = vmatpush1.bf16.msra.mxu0 %v421
    %517 = vmatprep.subr.bf16.mxu0 0
    %518 = vmatpush1.bf16.msra.mxu0 %v422
    %519 = vmatprep.mubr.bf16.mxu0 %v163
    %520 = vmatmul.mubr.bf16.gmra.mrb[0].mxu0 %v162
    %v521 = vpop.f32.mrb[0].mxu0
    %v522 = vadd.f32 0.0, %v521
    %v523 = vpop.f32.mrb[0].mxu0
    %v524 = vpop.f32.mrb[0].mxu0
    %v525 = vpop.f32.mrb[0].mxu0
    %526 = vdwg.mxu0
    %527 = vmatprep.subr.bf16.mxu0 0
    %528 = vmatpush1.bf16.msra.mxu0 %v423
    %529 = vmatprep.subr.bf16.mxu0 0
    %530 = vmatpush1.bf16.msra.mxu0 %v424
    %531 = vmatprep.subr.bf16.mxu0 0
    %532 = vmatpush1.bf16.msra.mxu0 %v425
    %533 = vmatprep.subr.bf16.mxu0 0
    %534 = vmatpush1.bf16.msra.mxu0 %v426
    %535 = vmatprep.subr.bf16.mxu0 0
    %536 = vmatpush1.bf16.msra.mxu0 %v427
    %537 = vmatprep.subr.bf16.mxu0 0
    %538 = vmatpush1.bf16.msra.mxu0 %v428
    %539 = vmatprep.subr.bf16.mxu0 0
    %540 = vmatpush1.bf16.msra.mxu0 %v429
    %541 = vmatprep.subr.bf16.mxu0 0
    %542 = vmatpush1.bf16.msra.mxu0 %v430
    %543 = vmatprep.subr.bf16.mxu0 0
    %544 = vmatpush1.bf16.msra.mxu0 %v431
    %545 = vmatprep.subr.bf16.mxu0 0
    %546 = vmatpush1.bf16.msra.mxu0 %v432
    %547 = vmatprep.subr.bf16.mxu0 0
    %548 = vmatpush1.bf16.msra.mxu0 %v433
    %549 = vmatprep.subr.bf16.mxu0 0
    %550 = vmatpush1.bf16.msra.mxu0 %v434
    %551 = vmatprep.subr.bf16.mxu0 0
    %552 = vmatpush1.bf16.msra.mxu0 %v435
    %553 = vmatprep.subr.bf16.mxu0 0
    %554 = vmatpush1.bf16.msra.mxu0 %v436
    %555 = vmatprep.subr.bf16.mxu0 0
    %556 = vmatpush1.bf16.msra.mxu0 %v437
    %557 = vmatprep.subr.bf16.mxu0 0
    %558 = vmatpush1.bf16.msra.mxu0 %v438
    %559 = vmatprep.mubr.bf16.mxu0 %v165
    %560 = vmatmul.mubr.bf16.gmra.mrb[0].mxu0 %v164
    %v561 = vpop.f32.mrb[0].mxu0
    %v562 = vadd.f32 %v522, %v561
    %v563 = vpop.f32.mrb[0].mxu0
    %v564 = vpop.f32.mrb[0].mxu0
    %v565 = vpop.f32.mrb[0].mxu0
    %566 = vdwg.mxu0
    %567 = vmatprep.subr.bf16.mxu0 0
    %568 = vmatpush1.bf16.msra.mxu0 %v439
    %569 = vmatprep.subr.bf16.mxu0 0
    %570 = vmatpush1.bf16.msra.mxu0 %v440
    %571 = vmatprep.subr.bf16.mxu0 0
    %572 = vmatpush1.bf16.msra.mxu0 %v441
    %573 = vmatprep.subr.bf16.mxu0 0
    %574 = vmatpush1.bf16.msra.mxu0 %v442
    %575 = vmatprep.subr.bf16.mxu0 0
    %576 = vmatpush1.bf16.msra.mxu0 %v443
    %577 = vmatprep.subr.bf16.mxu0 0
    %578 = vmatpush1.bf16.msra.mxu0 %v444
    %579 = vmatprep.subr.bf16.mxu0 0
    %580 = vmatpush1.bf16.msra.mxu0 %v445
    %581 = vmatprep.subr.bf16.mxu0 0
    %582 = vmatpush1.bf16.msra.mxu0 %v446
    %583 = vmatprep.subr.bf16.mxu0 0
    %584 = vmatpush1.bf16.msra.mxu0 0
    %585 = vmatprep.subr.bf16.mxu0 0
    %586 = vmatpush1.bf16.msra.mxu0 0
    %587 = vmatprep.subr.bf16.mxu0 0
    %588 = vmatpush1.bf16.msra.mxu0 0
    %589 = vmatprep.subr.bf16.mxu0 0
    %590 = vmatpush1.bf16.msra.mxu0 0
    %591 = vmatprep.subr.bf16.mxu0 0
    %592 = vmatpush1.bf16.msra.mxu0 0
    %593 = vmatprep.subr.bf16.mxu0 0
    %594 = vmatpush1.bf16.msra.mxu0 0
    %595 = vmatprep.subr.bf16.mxu0 0
    %596 = vmatpush1.bf16.msra.mxu0 0
    %597 = vmatprep.subr.bf16.mxu0 0
    %598 = vmatpush1.bf16.msra.mxu0 0
    %599 = vmatprep.mubr.bf16.mxu0 0
    %600 = vmatmul.mubr.bf16.gmra.mrb[0].mxu0 %v166
    %v601 = vpop.f32.mrb[0].mxu0
    %v602 = vadd.f32 %v562, %v601
    %v603 = vpop.f32.mrb[0].mxu0
    %v604 = vpop.f32.mrb[0].mxu0
    %v605 = vpop.f32.mrb[0].mxu0
    %606 = vdwg.mxu0
    %607 = vmatprep.subr.bf16.mxu0 0
    %608 = vmatpush1.bf16.msra.mxu0 %v407
    %609 = vmatprep.subr.bf16.mxu0 0
    %610 = vmatpush1.bf16.msra.mxu0 %v408
    %611 = vmatprep.subr.bf16.mxu0 0
    %612 = vmatpush1.bf16.msra.mxu0 %v409
    %613 = vmatprep.subr.bf16.mxu0 0
    %614 = vmatpush1.bf16.msra.mxu0 %v410
    %615 = vmatprep.subr.bf16.mxu0 0
    %616 = vmatpush1.bf16.msra.mxu0 %v411
    %617 = vmatprep.subr.bf16.mxu0 0
    %618 = vmatpush1.bf16.msra.mxu0 %v412
    %619 = vmatprep.subr.bf16.mxu0 0
    %620 = vmatpush1.bf16.msra.mxu0 %v413
    %621 = vmatprep.subr.bf16.mxu0 0
    %622 = vmatpush1.bf16.msra.mxu0 %v414
    %623 = vmatprep.subr.bf16.mxu0 0
    %624 = vmatpush1.bf16.msra.mxu0 %v415
    %625 = vmatprep.subr.bf16.mxu0 0
    %626 = vmatpush1.bf16.msra.mxu0 %v416
    %627 = vmatprep.subr.bf16.mxu0 0
    %628 = vmatpush1.bf16.msra.mxu0 %v417
    %629 = vmatprep.subr.bf16.mxu0 0
    %630 = vmatpush1.bf16.msra.mxu0 %v418
    %631 = vmatprep.subr.bf16.mxu0 0
    %632 = vmatpush1.bf16.msra.mxu0 %v419
    %633 = vmatprep.subr.bf16.mxu0 0
    %634 = vmatpush1.bf16.msra.mxu0 %v420
    %635 = vmatprep.subr.bf16.mxu0 0
    %636 = vmatpush1.bf16.msra.mxu0 %v421
    %637 = vmatprep.subr.bf16.mxu0 0
    %638 = vmatpush1.bf16.msra.mxu0 %v422
    %639 = vmatprep.mubr.bf16.mxu0 %v89
    %640 = vmatmul.mubr.bf16.gmra.mrb[0].mxu0 %v88
    %v641 = vpop.f32.mrb[0].mxu0
    %v642 = vadd.f32 %v602, %v641
    %v643 = vpop.f32.mrb[0].mxu0
    %v644 = vpop.f32.mrb[0].mxu0
    %v645 = vpop.f32.mrb[0].mxu0
    %646 = vdwg.mxu0
    %647 = vmatprep.subr.bf16.mxu0 0
    %648 = vmatpush1.bf16.msra.mxu0 %v423
    %649 = vmatprep.subr.bf16.mxu0 0
    %650 = vmatpush1.bf16.msra.mxu0 %v424
    %651 = vmatprep.subr.bf16.mxu0 0
    %652 = vmatpush1.bf16.msra.mxu0 %v425
    %653 = vmatprep.subr.bf16.mxu0 0
    %654 = vmatpush1.bf16.msra.mxu0 %v426
    %655 = vmatprep.subr.bf16.mxu0 0
    %656 = vmatpush1.bf16.msra.mxu0 %v427
    %657 = vmatprep.subr.bf16.mxu0 0
    %658 = vmatpush1.bf16.msra.mxu0 %v428
    %659 = vmatprep.subr.bf16.mxu0 0
    %660 = vmatpush1.bf16.msra.mxu0 %v429
    %661 = vmatprep.subr.bf16.mxu0 0
    %662 = vmatpush1.bf16.msra.mxu0 %v430
    %663 = vmatprep.subr.bf16.mxu0 0
    %664 = vmatpush1.bf16.msra.mxu0 %v431
    %665 = vmatprep.subr.bf16.mxu0 0
    %666 = vmatpush1.bf16.msra.mxu0 %v432
    %667 = vmatprep.subr.bf16.mxu0 0
    %668 = vmatpush1.bf16.msra.mxu0 %v433
    %669 = vmatprep.subr.bf16.mxu0 0
    %670 = vmatpush1.bf16.msra.mxu0 %v434
    %671 = vmatprep.subr.bf16.mxu0 0
    %672 = vmatpush1.bf16.msra.mxu0 %v435
    %673 = vmatprep.subr.bf16.mxu0 0
    %674 = vmatpush1.bf16.msra.mxu0 %v436
    %675 = vmatprep.subr.bf16.mxu0 0
    %676 = vmatpush1.bf16.msra.mxu0 %v437
    %677 = vmatprep.subr.bf16.mxu0 0
    %678 = vmatpush1.bf16.msra.mxu0 %v438
    %679 = vmatprep.mubr.bf16.mxu0 %v91
    %680 = vmatmul.mubr.bf16.gmra.mrb[0].mxu0 %v90
    %v681 = vpop.f32.mrb[0].mxu0
    %v682 = vadd.f32 %v642, %v681
    %v683 = vpop.f32.mrb[0].mxu0
    %v684 = vpop.f32.mrb[0].mxu0
    %v685 = vpop.f32.mrb[0].mxu0
    %686 = vdwg.mxu0
    %687 = vmatprep.subr.bf16.mxu0 0
    %688 = vmatpush1.bf16.msra.mxu0 %v439
    %689 = vmatprep.subr.bf16.mxu0 0
    %690 = vmatpush1.bf16.msra.mxu0 %v440
    %691 = vmatprep.subr.bf16.mxu0 0
    %692 = vmatpush1.bf16.msra.mxu0 %v441
    %693 = vmatprep.subr.bf16.mxu0 0
    %694 = vmatpush1.bf16.msra.mxu0 %v442
    %695 = vmatprep.subr.bf16.mxu0 0
    %696 = vmatpush1.bf16.msra.mxu0 %v443
    %697 = vmatprep.subr.bf16.mxu0 0
    %698 = vmatpush1.bf16.msra.mxu0 %v444
    %699 = vmatprep.subr.bf16.mxu0 0
    %700 = vmatpush1.bf16.msra.mxu0 %v445
    %701 = vmatprep.subr.bf16.mxu0 0
    %702 = vmatpush1.bf16.msra.mxu0 %v446
    %703 = vmatprep.subr.bf16.mxu0 0
    %704 = vmatpush1.bf16.msra.mxu0 0
    %705 = vmatprep.subr.bf16.mxu0 0
    %706 = vmatpush1.bf16.msra.mxu0 0
    %707 = vmatprep.subr.bf16.mxu0 0
    %708 = vmatpush1.bf16.msra.mxu0 0
    %709 = vmatprep.subr.bf16.mxu0 0
    %710 = vmatpush1.bf16.msra.mxu0 0
    %711 = vmatprep.subr.bf16.mxu0 0
    %712 = vmatpush1.bf16.msra.mxu0 0
    %713 = vmatprep.subr.bf16.mxu0 0
    %714 = vmatpush1.bf16.msra.mxu0 0
    %715 = vmatprep.subr.bf16.mxu0 0
    %716 = vmatpush1.bf16.msra.mxu0 0
    %717 = vmatprep.subr.bf16.mxu0 0
    %718 = vmatpush1.bf16.msra.mxu0 0
    %719 = vmatprep.mubr.bf16.mxu0 0
    %720 = vmatmul.mubr.bf16.gmra.mrb[0].mxu0 %v92
    %v721 = vpop.f32.mrb[0].mxu0
    %v722 = vadd.f32 %v682, %v721
    %v723 = vpop.f32.mrb[0].mxu0
    %v724 = vpop.f32.mrb[0].mxu0
    %v725 = vpop.f32.mrb[0].mxu0
    %726 = vdwg.mxu0
    %v727 = vld [vmem:[#allocation7] sm:$0xf]
    %v728 = vld [vmem:[#allocation7 + $0x4] sm:$0xf]
    %v729 = vld [vmem:[#allocation7 + $0x8] sm:$0xf]
    %v730 = vld [vmem:[#allocation7 + $0xc] sm:$0xf]
    %v731 = vld [vmem:[#allocation7 + $0x10] sm:$0xf]
    %v732 = vld [vmem:[#allocation7 + $0x14] sm:$0xf]
    %v733 = vld [vmem:[#allocation7 + $0x18] sm:$0xf]
    %v734 = vld [vmem:[#allocation7 + $0x1c] sm:$0xf]
    %v735 = vld [vmem:[#allocation7 + $0x20] sm:$0xf]
    %v736 = vld [vmem:[#allocation7 + $0x24] sm:$0xf]
    %v737 = vld [vmem:[#allocation7 + $0x28] sm:$0xf]
    %v738 = vld [vmem:[#allocation7 + $0x2c] sm:$0xf]
    %v739 = vld [vmem:[#allocation7 + $0x30] sm:$0xf]
    %v740 = vld [vmem:[#allocation7 + $0x34] sm:$0xf]
    %v741 = vld [vmem:[#allocation7 + $0x38] sm:$0xf]
    %v742 = vld [vmem:[#allocation7 + $0x3c] sm:$0xf]
    %v743 = vld [vmem:[#allocation7 + $0x40] sm:$0xf]
    %v744 = vld [vmem:[#allocation7 + $0x44] sm:$0xf]
    %v745 = vld [vmem:[#allocation7 + $0x48] sm:$0xf]
    %v746 = vld [vmem:[#allocation7 + $0x4c] sm:$0xf]
    %v747 = vld [vmem:[#allocation7 + $0x50] sm:$0xf]
    %v748 = vld [vmem:[#allocation7 + $0x54] sm:$0xf]
    %v749 = vld [vmem:[#allocation7 + $0x58] sm:$0xf]
    %v750 = vld [vmem:[#allocation7 + $0x5c] sm:$0xf]
    %v751 = vld [vmem:[#allocation7 + $0x60] sm:$0xf]
    %v752 = vld [vmem:[#allocation7 + $0x64] sm:$0xf]
    %v753 = vld [vmem:[#allocation7 + $0x68] sm:$0xf]
    %v754 = vld [vmem:[#allocation7 + $0x6c] sm:$0xf]
    %v755 = vld [vmem:[#allocation7 + $0x70] sm:$0xf]
    %v756 = vld [vmem:[#allocation7 + $0x74] sm:$0xf]
    %v757 = vld [vmem:[#allocation7 + $0x78] sm:$0xf]
    %v758 = vld [vmem:[#allocation7 + $0x7c] sm:$0xf]
    %v759 = vld [vmem:[#allocation7 + $0x80] sm:$0xf]
    %v760 = vld [vmem:[#allocation7 + $0x84] sm:$0xf]
    %v761 = vld [vmem:[#allocation7 + $0x88] sm:$0xf]
    %v762 = vld [vmem:[#allocation7 + $0x8c] sm:$0xf]
    %v763 = vld [vmem:[#allocation7 + $0x90] sm:$0xf]
    %v764 = vld [vmem:[#allocation7 + $0x94] sm:$0xf]
    %v765 = vld [vmem:[#allocation7 + $0x98] sm:$0xf]
    %v766 = vld [vmem:[#allocation7 + $0x9c] sm:$0xf]
    %v767 = vld [vmem:[#allocation7 + $0xa0] sm:$0xf]
    %v768 = vld [vmem:[#allocation7 + $0xa4] sm:$0xf]
    %v769 = vld [vmem:[#allocation7 + $0xa8] sm:$0xf]
    %v770 = vld [vmem:[#allocation7 + $0xac] sm:$0xf]
    %v771 = vld [vmem:[#allocation7 + $0xb0] sm:$0xf]
    %v772 = vld [vmem:[#allocation7 + $0xb4] sm:$0xf]
    %v773 = vld [vmem:[#allocation7 + $0xb8] sm:$0xf]
    %v774 = vld [vmem:[#allocation7 + $0xbc] sm:$0xf]
    %v775 = vld [vmem:[#allocation7 + $0xc0] sm:$0xf]
    %v776 = vld [vmem:[#allocation7 + $0xc4] sm:$0xf]
    %v777 = vld [vmem:[#allocation7 + $0xc8] sm:$0xf]
    %v778 = vld [vmem:[#allocation7 + $0xcc] sm:$0xf]
    %v779 = vld [vmem:[#allocation7 + $0xd0] sm:$0xf]
    %v780 = vld [vmem:[#allocation7 + $0xd4] sm:$0xf]
    %v781 = vld [vmem:[#allocation7 + $0xd8] sm:$0xf]
    %v782 = vld [vmem:[#allocation7 + $0xdc] sm:$0xf]
    %v783 = vld [vmem:[#allocation7 + $0xe0] sm:$0xf]
    %v784 = vld [vmem:[#allocation7 + $0xe4] sm:$0xf]
    %v785 = vld [vmem:[#allocation7 + $0xe8] sm:$0xf]
    %v786 = vld [vmem:[#allocation7 + $0xec] sm:$0xf]
    %v787 = vld [vmem:[#allocation7 + $0xf0] sm:$0xf]
    %v788 = vld [vmem:[#allocation7 + $0xf4] sm:$0xf]
    %v789 = vld [vmem:[#allocation7 + $0xf8] sm:$0xf]
    %v790 = vld [vmem:[#allocation7 + $0xfc] sm:$0xf]
    %v791 = vld [vmem:[#allocation7 + $0x100] sm:$0xf]
    %v792 = vld [vmem:[#allocation7 + $0x104] sm:$0xf]
    %v793 = vld [vmem:[#allocation7 + $0x108] sm:$0xf]
    %v794 = vld [vmem:[#allocation7 + $0x10c] sm:$0xf]
    %v795 = vld [vmem:[#allocation7 + $0x110] sm:$0xf]
    %v796 = vld [vmem:[#allocation7 + $0x114] sm:$0xf]
    %v797 = vld [vmem:[#allocation7 + $0x118] sm:$0xf]
    %v798 = vld [vmem:[#allocation7 + $0x11c] sm:$0xf]
    %v799 = vld [vmem:[#allocation7 + $0x120] sm:$0xf]
    %v800 = vld [vmem:[#allocation7 + $0x124] sm:$0xf]
    %v801 = vld [vmem:[#allocation7 + $0x128] sm:$0xf]
    %v802 = vld [vmem:[#allocation7 + $0x12c] sm:$0xf]
    %v803 = vld [vmem:[#allocation7 + $0x130] sm:$0xf]
    %v804 = vld [vmem:[#allocation7 + $0x134] sm:$0xf]
    %v805 = vld [vmem:[#allocation7 + $0x138] sm:$0xf]
    %v806 = vld [vmem:[#allocation7 + $0x13c] sm:$0xf]
    %v887 = vunpack.c.l.b16 %v727
    %v888 = vunpack.c.l.b16 %v728
    %v889 = vunpack.c.l.b16 %v729
    %v890 = vunpack.c.l.b16 %v730
    %v891 = vunpack.c.l.b16 %v731
    %v892 = vunpack.c.l.b16 %v732
    %v893 = vunpack.c.l.b16 %v733
    %v894 = vunpack.c.l.b16 %v734
    %v895 = vunpack.c.l.b16 %v735
    %v896 = vunpack.c.l.b16 %v736
    %v897 = vunpack.c.l.b16 %v737
    %v898 = vunpack.c.l.b16 %v738
    %v899 = vunpack.c.l.b16 %v739
    %v900 = vunpack.c.l.b16 %v740
    %v901 = vunpack.c.l.b16 %v741
    %v902 = vunpack.c.l.b16 %v742
    %v903 = vunpack.c.l.b16 %v743
    %v904 = vunpack.c.l.b16 %v744
    %v905 = vunpack.c.l.b16 %v745
    %v906 = vunpack.c.l.b16 %v746
    %v907 = vunpack.c.l.b16 %v747
    %v908 = vunpack.c.l.b16 %v748
    %v909 = vunpack.c.l.b16 %v749
    %v910 = vunpack.c.l.b16 %v750
    %v911 = vunpack.c.l.b16 %v751
    %v912 = vunpack.c.l.b16 %v752
    %v913 = vunpack.c.l.b16 %v753
    %v914 = vunpack.c.l.b16 %v754
    %v915 = vunpack.c.l.b16 %v755
    %v916 = vunpack.c.l.b16 %v756
    %v917 = vunpack.c.l.b16 %v757
    %v918 = vunpack.c.l.b16 %v758
    %v919 = vunpack.c.l.b16 %v759
    %v920 = vunpack.c.l.b16 %v760
    %v921 = vunpack.c.l.b16 %v761
    %v922 = vunpack.c.l.b16 %v762
    %v923 = vunpack.c.l.b16 %v763
    %v924 = vunpack.c.l.b16 %v764
    %v925 = vunpack.c.l.b16 %v765
    %v926 = vunpack.c.l.b16 %v766
    %v927 = vunpack.c.l.b16 %v767
    %v928 = vunpack.c.l.b16 %v768
    %v929 = vunpack.c.l.b16 %v769
    %v930 = vunpack.c.l.b16 %v770
    %v931 = vunpack.c.l.b16 %v771
    %v932 = vunpack.c.l.b16 %v772
    %v933 = vunpack.c.l.b16 %v773
    %v934 = vunpack.c.l.b16 %v774
    %v935 = vunpack.c.l.b16 %v775
    %v936 = vunpack.c.l.b16 %v776
    %v937 = vunpack.c.l.b16 %v777
    %v938 = vunpack.c.l.b16 %v778
    %v939 = vunpack.c.l.b16 %v779
    %v940 = vunpack.c.l.b16 %v780
    %v941 = vunpack.c.l.b16 %v781
    %v942 = vunpack.c.l.b16 %v782
    %v943 = vunpack.c.l.b16 %v783
    %v944 = vunpack.c.l.b16 %v784
    %v945 = vunpack.c.l.b16 %v785
    %v946 = vunpack.c.l.b16 %v786
    %v947 = vunpack.c.l.b16 %v787
    %v948 = vunpack.c.l.b16 %v788
    %v949 = vunpack.c.l.b16 %v789
    %v950 = vunpack.c.l.b16 %v790
    %v951 = vunpack.c.l.b16 %v791
    %v952 = vunpack.c.l.b16 %v792
    %v953 = vunpack.c.l.b16 %v793
    %v954 = vunpack.c.l.b16 %v794
    %v955 = vunpack.c.l.b16 %v795
    %v956 = vunpack.c.l.b16 %v796
    %v957 = vunpack.c.l.b16 %v797
    %v958 = vunpack.c.l.b16 %v798
    %v959 = vunpack.c.l.b16 %v799
    %v960 = vunpack.c.l.b16 %v800
    %v961 = vunpack.c.l.b16 %v801
    %v962 = vunpack.c.l.b16 %v802
    %v963 = vunpack.c.l.b16 %v803
    %v964 = vunpack.c.l.b16 %v804
    %v965 = vunpack.c.l.b16 %v805
    %v966 = vunpack.c.l.b16 %v806
    %v967 = vpack.c.b16 %v888, %v887
    %v968 = vpack.c.b16 %v890, %v889
    %v969 = vpack.c.b16 %v892, %v891
    %v970 = vpack.c.b16 %v894, %v893
    %v971 = vpack.c.b16 %v896, %v895
    %v972 = vpack.c.b16 %v898, %v897
    %v973 = vpack.c.b16 %v900, %v899
    %v974 = vpack.c.b16 %v902, %v901
    %v975 = vpack.c.b16 %v904, %v903
    %v976 = vpack.c.b16 %v906, %v905
    %v977 = vpack.c.b16 %v908, %v907
    %v978 = vpack.c.b16 %v910, %v909
    %v979 = vpack.c.b16 %v912, %v911
    %v980 = vpack.c.b16 %v914, %v913
    %v981 = vpack.c.b16 %v916, %v915
    %v982 = vpack.c.b16 %v918, %v917
    %v983 = vpack.c.b16 %v920, %v919
    %v984 = vpack.c.b16 %v922, %v921
    %v985 = vpack.c.b16 %v924, %v923
    %v986 = vpack.c.b16 %v926, %v925
    %v987 = vpack.c.b16 %v928, %v927
    %v988 = vpack.c.b16 %v930, %v929
    %v989 = vpack.c.b16 %v932, %v931
    %v990 = vpack.c.b16 %v934, %v933
    %v991 = vpack.c.b16 %v936, %v935
    %v992 = vpack.c.b16 %v938, %v937
    %v993 = vpack.c.b16 %v940, %v939
    %v994 = vpack.c.b16 %v942, %v941
    %v995 = vpack.c.b16 %v944, %v943
    %v996 = vpack.c.b16 %v946, %v945
    %v997 = vpack.c.b16 %v948, %v947
    %v998 = vpack.c.b16 %v950, %v949
    %v999 = vpack.c.b16 %v952, %v951
    %v1000 = vpack.c.b16 %v954, %v953
    %v1001 = vpack.c.b16 %v956, %v955
    %v1002 = vpack.c.b16 %v958, %v957
    %v1003 = vpack.c.b16 %v960, %v959
    %v1004 = vpack.c.b16 %v962, %v961
    %v1005 = vpack.c.b16 %v964, %v963
    %v1006 = vpack.c.b16 %v966, %v965
    %1047 = vmatprep.subr.bf16.mxu0 0
    %1048 = vmatpush1.bf16.msra.mxu0 %v967
    %1049 = vmatprep.subr.bf16.mxu0 0
    %1050 = vmatpush1.bf16.msra.mxu0 %v968
    %1051 = vmatprep.subr.bf16.mxu0 0
    %1052 = vmatpush1.bf16.msra.mxu0 %v969
    %1053 = vmatprep.subr.bf16.mxu0 0
    %1054 = vmatpush1.bf16.msra.mxu0 %v970
    %1055 = vmatprep.subr.bf16.mxu0 0
    %1056 = vmatpush1.bf16.msra.mxu0 %v971
    %1057 = vmatprep.subr.bf16.mxu0 0
    %1058 = vmatpush1.bf16.msra.mxu0 %v972
    %1059 = vmatprep.subr.bf16.mxu0 0
    %1060 = vmatpush1.bf16.msra.mxu0 %v973
    %1061 = vmatprep.subr.bf16.mxu0 0
    %1062 = vmatpush1.bf16.msra.mxu0 %v974
    %1063 = vmatprep.subr.bf16.mxu0 0
    %1064 = vmatpush1.bf16.msra.mxu0 %v975
    %1065 = vmatprep.subr.bf16.mxu0 0
    %1066 = vmatpush1.bf16.msra.mxu0 %v976
    %1067 = vmatprep.subr.bf16.mxu0 0
    %1068 = vmatpush1.bf16.msra.mxu0 %v977
    %1069 = vmatprep.subr.bf16.mxu0 0
    %1070 = vmatpush1.bf16.msra.mxu0 %v978
    %1071 = vmatprep.subr.bf16.mxu0 0
    %1072 = vmatpush1.bf16.msra.mxu0 %v979
    %1073 = vmatprep.subr.bf16.mxu0 0
    %1074 = vmatpush1.bf16.msra.mxu0 %v980
    %1075 = vmatprep.subr.bf16.mxu0 0
    %1076 = vmatpush1.bf16.msra.mxu0 %v981
    %1077 = vmatprep.subr.bf16.mxu0 0
    %1078 = vmatpush1.bf16.msra.mxu0 %v982
    %1079 = vmatprep.mubr.bf16.mxu0 %v89
    %1080 = vmatmul.mubr.bf16.gmra.mrb[0].mxu0 %v88
    %v1081 = vpop.f32.mrb[0].mxu0
    %v1082 = vadd.f32 0.0, %v1081
    %v1083 = vpop.f32.mrb[0].mxu0
    %v1084 = vpop.f32.mrb[0].mxu0
    %v1085 = vpop.f32.mrb[0].mxu0
    %1086 = vdwg.mxu0
    %1087 = vmatprep.subr.bf16.mxu0 0
    %1088 = vmatpush1.bf16.msra.mxu0 %v983
    %1089 = vmatprep.subr.bf16.mxu0 0
    %1090 = vmatpush1.bf16.msra.mxu0 %v984
    %1091 = vmatprep.subr.bf16.mxu0 0
    %1092 = vmatpush1.bf16.msra.mxu0 %v985
    %1093 = vmatprep.subr.bf16.mxu0 0
    %1094 = vmatpush1.bf16.msra.mxu0 %v986
    %1095 = vmatprep.subr.bf16.mxu0 0
    %1096 = vmatpush1.bf16.msra.mxu0 %v987
    %1097 = vmatprep.subr.bf16.mxu0 0
    %1098 = vmatpush1.bf16.msra.mxu0 %v988
    %1099 = vmatprep.subr.bf16.mxu0 0
    %1100 = vmatpush1.bf16.msra.mxu0 %v989
    %1101 = vmatprep.subr.bf16.mxu0 0
    %1102 = vmatpush1.bf16.msra.mxu0 %v990
    %1103 = vmatprep.subr.bf16.mxu0 0
    %1104 = vmatpush1.bf16.msra.mxu0 %v991
    %1105 = vmatprep.subr.bf16.mxu0 0
    %1106 = vmatpush1.bf16.msra.mxu0 %v992
    %1107 = vmatprep.subr.bf16.mxu0 0
    %1108 = vmatpush1.bf16.msra.mxu0 %v993
    %1109 = vmatprep.subr.bf16.mxu0 0
    %1110 = vmatpush1.bf16.msra.mxu0 %v994
    %1111 = vmatprep.subr.bf16.mxu0 0
    %1112 = vmatpush1.bf16.msra.mxu0 %v995
    %1113 = vmatprep.subr.bf16.mxu0 0
    %1114 = vmatpush1.bf16.msra.mxu0 %v996
    %1115 = vmatprep.subr.bf16.mxu0 0
    %1116 = vmatpush1.bf16.msra.mxu0 %v997
    %1117 = vmatprep.subr.bf16.mxu0 0
    %1118 = vmatpush1.bf16.msra.mxu0 %v998
    %1119 = vmatprep.mubr.bf16.mxu0 %v91
    %1120 = vmatmul.mubr.bf16.gmra.mrb[0].mxu0 %v90
    %v1121 = vpop.f32.mrb[0].mxu0
    %v1122 = vadd.f32 %v1082, %v1121
    %v1123 = vpop.f32.mrb[0].mxu0
    %v1124 = vpop.f32.mrb[0].mxu0
    %v1125 = vpop.f32.mrb[0].mxu0
    %1126 = vdwg.mxu0
    %1127 = vmatprep.subr.bf16.mxu0 0
    %1128 = vmatpush1.bf16.msra.mxu0 %v999
    %1129 = vmatprep.subr.bf16.mxu0 0
    %1130 = vmatpush1.bf16.msra.mxu0 %v1000
    %1131 = vmatprep.subr.bf16.mxu0 0
    %1132 = vmatpush1.bf16.msra.mxu0 %v1001
    %1133 = vmatprep.subr.bf16.mxu0 0
    %1134 = vmatpush1.bf16.msra.mxu0 %v1002
    %1135 = vmatprep.subr.bf16.mxu0 0
    %1136 = vmatpush1.bf16.msra.mxu0 %v1003
    %1137 = vmatprep.subr.bf16.mxu0 0
    %1138 = vmatpush1.bf16.msra.mxu0 %v1004
    %1139 = vmatprep.subr.bf16.mxu0 0
    %1140 = vmatpush1.bf16.msra.mxu0 %v1005
    %1141 = vmatprep.subr.bf16.mxu0 0
    %1142 = vmatpush1.bf16.msra.mxu0 %v1006
    %1143 = vmatprep.subr.bf16.mxu0 0
    %1144 = vmatpush1.bf16.msra.mxu0 0
    %1145 = vmatprep.subr.bf16.mxu0 0
    %1146 = vmatpush1.bf16.msra.mxu0 0
    %1147 = vmatprep.subr.bf16.mxu0 0
    %1148 = vmatpush1.bf16.msra.mxu0 0
    %1149 = vmatprep.subr.bf16.mxu0 0
    %1150 = vmatpush1.bf16.msra.mxu0 0
    %1151 = vmatprep.subr.bf16.mxu0 0
    %1152 = vmatpush1.bf16.msra.mxu0 0
    %1153 = vmatprep.subr.bf16.mxu0 0
    %1154 = vmatpush1.bf16.msra.mxu0 0
    %1155 = vmatprep.subr.bf16.mxu0 0
    %1156 = vmatpush1.bf16.msra.mxu0 0
    %1157 = vmatprep.subr.bf16.mxu0 0
    %1158 = vmatpush1.bf16.msra.mxu0 0
    %1159 = vmatprep.mubr.bf16.mxu0 0
    %1160 = vmatmul.mubr.bf16.gmra.mrb[0].mxu0 %v92
    %v1161 = vpop.f32.mrb[0].mxu0
    %v1162 = vadd.f32 %v1122, %v1161
    %v1163 = vpop.f32.mrb[0].mxu0
    %v1164 = vpop.f32.mrb[0].mxu0
    %v1165 = vpop.f32.mrb[0].mxu0
    %1166 = vdwg.mxu0
    %v1167 = vadd.f32 %v722, %v1162
    %1168 = vst [vmem:[#allocation8] sm:$0x3] %v1167
    // Predicated region
    $region26: #{tpu_custom_call.1} parent=1 // pred_check
      _
    $region27: #{tpu_custom_call.1} parent=1 // pred_check_branch
      %1170 = sbr.rel (0) target = $region29
    $region28: #{tpu_custom_call.1} parent=1 // pred_region
      %s1172 = ssub.s32 32, 32
      %1173 = vsyncadd [#allocation4], %s1172
      %s1175 = sshll.u32 [#allocation8], 4
      %s1176 = int_to_ptr.vmem [resolvable:$true] %s1175
      %1178 = dma.vmem_to_hbm [thread:$0]  %s1176, 32, %s3, [#allocation4]
    $region29: #{tpu_custom_call.1} parent=1 // pred_fallthru
      _
    // Predicated region
    $region30: #{tpu_custom_call.1} parent=1 // pred_check
      _
    $region31: #{tpu_custom_call.1} parent=1 // pred_check_branch
      %1180 = sbr.rel (0) target = $region33
    $region32: #{tpu_custom_call.1} parent=1 // pred_region
      %1181 = dma.done [#allocation4], 32
    $region33: #{tpu_custom_call.1} parent=1 // pred_fallthru
      _
    %1182 = vsyncpa [#allocation3], 1
    %1183 = vsyncpa [#allocation6], 1
    %1184 = vsyncpa [#allocation4], 1

</llo_original>
